<compile_context>
chip_gen: v7x
topology: tpu7x:2x2x1
jax: 0.10.0
libtpu: 0.0.40
codegen_flags: <defaults>
</compile_context>

<pallas_src>
import math

import jax
import jax.numpy as jnp
from jax.experimental import pallas as pl
from jax.experimental.pallas import tpu as pltpu


def _round_up(x, m):
    return ((x + m - 1) // m) * m


# --------------------------------- kernels ----------------------------------


def ffn_resident_kernel(x_ref, w1_ref, b1_ref, w2_ref, b2_ref, o_ref):
    """Weights-resident path.  Grid: (M_pad // tm,)  [parallel]."""
    h = jnp.dot(x_ref[...], w1_ref[...], preferred_element_type=jnp.float32)
    h = h + b1_ref[...]                # f32 bias add
    h = h * jax.nn.sigmoid(h)          # SiLU in f32 (VPU + EUP)
    # Dropout(p=0.0) -> identity.
    y = jnp.dot(h.astype(w2_ref.dtype), w2_ref[...],
                preferred_element_type=jnp.float32)
    o_ref[...] = (y + b2_ref[...]).astype(o_ref.dtype)
    # Dropout(p=0.0) -> identity.


def ffn_streamed_kernel(x_ref, w1_ref, b1_ref, w2_ref, b2_ref, o_ref, acc_ref):
    """Hidden-dim streamed path.  Grid: (M_pad//tm [parallel], H_pad//th [arbitrary])."""
    h_idx = pl.program_id(1)

    @pl.when(h_idx == 0)
    def _():
        # Fold the output bias into the accumulator init (finalize = pure cast+store).
        acc_ref[...] = jnp.broadcast_to(b2_ref[...], acc_ref.shape)

    h = jnp.dot(x_ref[...], w1_ref[...], preferred_element_type=jnp.float32)
    h = h + b1_ref[...]
    h = h * jax.nn.sigmoid(h)
    # Dropout(p=0.0) -> identity.
    acc_ref[...] += jnp.dot(h.astype(w2_ref.dtype), w2_ref[...],
                            preferred_element_type=jnp.float32)

    @pl.when(h_idx == pl.num_programs(1) - 1)
    def _():
        o_ref[...] = acc_ref[...].astype(o_ref.dtype)
    # Dropout(p=0.0) -> identity.


# --------------------------------- wrapper -----------------------------------

_VMEM_BUDGET = 44 * 2**20  # conservative: must also fit v7x's 64 MiB / TC VMEM


def prepare_ffn_params(w1, b1, w2, b2):
    """One-time parameter prep (pad to multiples of 128 + bf16 cast).

    Hoisted out of the per-call path so these HBM round trips are not paid on
    every forward.  w1: (dim, hidden), b1: (hidden,), w2: (hidden, dim), b2: (dim,).
    """
    D, H = w1.shape
    D_pad = _round_up(D, 128)
    H_pad = _round_up(H, 128)
    return dict(
        dim=D, hidden=H,
        w1=jnp.pad(w1, ((0, D_pad - D), (0, H_pad - H))).astype(jnp.bfloat16),
        b1=jnp.pad(b1, (0, H_pad - H)).astype(jnp.float32).reshape(1, H_pad),
        w2=jnp.pad(w2, ((0, H_pad - H), (0, D_pad - D))).astype(jnp.bfloat16),
        b2=jnp.pad(b2, (0, D_pad - D)).astype(jnp.float32).reshape(1, D_pad),
    )


def feedforward(x, params, *, tm=512):
    """x: (..., dim) -> (..., dim).  params: output of prepare_ffn_params()."""
    D, H = params["dim"], params["hidden"]
    w1p, b1p, w2p, b2p = params["w1"], params["b1"], params["w2"], params["b2"]
    D_pad, H_pad = w1p.shape
    assert x.shape[-1] == D

    out_dtype = x.dtype
    out_bytes = jnp.dtype(out_dtype).itemsize
    lead_shape = x.shape[:-1]
    M = math.prod(lead_shape)

    # ---- M tiling: >=128 rows per tile, and >=2 parallel tiles when possible
    # so both v7x TensorCores get work.
    M128 = _round_up(M, 128)
    tm = min(tm, M128)
    if M128 // tm < 2 and M128 >= 256:
        tm = max(128, (M128 // 2) // 128 * 128)

    # ---- VMEM estimates (inputs/outputs double-buffered; weights counted
    # double-buffered too so the fit decision holds even if the single-buffer
    # request below is unsupported and we fall back to default buffering).
    def resident_vmem(tm_):
        return (2 * 2 * D_pad * H_pad * 2          # w1 + w2 (bf16)
                + 2 * tm_ * D_pad * 2              # x tiles (bf16)
                + 2 * tm_ * D_pad * out_bytes      # out tiles
                + tm_ * H_pad * 6                  # h: f32 + bf16 copy
                + tm_ * D_pad * 4                  # y (f32) before cast
                + (H_pad + D_pad) * 8)             # biases

    def streamed_vmem(tm_, th_):
        return (2 * 2 * D_pad * th_ * 2            # w1 + w2 tiles (bf16)
                + 2 * tm_ * D_pad * 2
                + 2 * tm_ * D_pad * out_bytes
                + tm_ * D_pad * 4                  # f32 accumulator
                + tm_ * th_ * 6
                + (th_ + D_pad) * 8)

    tm_cands = sorted({t for t in (tm, 256, 128) if t <= tm}, reverse=True)

    use_resident, th = False, None
    for t in tm_cands:
        if resident_vmem(t) <= _VMEM_BUDGET:
            tm, use_resident = t, True
            break

    if not use_resident:
        # th divides round_up(H, 128) exactly -> no extra hidden-dim padding.
        th_cands = [c for c in (1024, 896, 768, 640, 512, 384, 256, 128)
                    if H_pad % c == 0]
        tm, th = tm_cands[-1], th_cands[-1]
        done = False
        for t in tm_cands:           # prefer big tm (weight-stream intensity == tm)
            for c in th_cands:
                if streamed_vmem(t, c) <= _VMEM_BUDGET:
                    tm, th, done = t, c, True
                    break
            if done:
                break

    M_pad = _round_up(M, tm)
    n_m = M_pad // tm

    # ---- x: pad only if actually needed (common ViT dims need no copy).
    x2 = x.reshape(M, D)
    if (M_pad, D_pad) != (M, D):
        x2 = jnp.pad(x2, ((0, M_pad - M), (0, D_pad - D)))
    x2 = x2.astype(jnp.bfloat16)

    est = resident_vmem(tm) if use_resident else streamed_vmem(tm, th)
    compiler_params = pltpu.CompilerParams(
        dimension_semantics=("parallel",) if use_resident
        else ("parallel", "arbitrary"),
        vmem_limit_bytes=int(min(max(est * 1.2, 32 * 2**20), 50 * 2**20)),
    )

    # Cost estimate: two matmuls + sigmoid; weights are read once (resident) or
    # once per M tile (streamed).
    weight_bytes = 2 * D_pad * H_pad * 2
    weight_reads = 1 if use_resident else n_m
    cost = pl.CostEstimate(
        flops=int(4 * M_pad * D_pad * H_pad),
        transcendentals=int(M_pad * H_pad),
        bytes_accessed=int(M_pad * D_pad * 2                 # x (bf16)
                           + weight_reads * weight_bytes     # w1 + w2
                           + weight_reads * H_pad * 4        # b1
                           + D_pad * 4                       # b2
                           + M_pad * D_pad * out_bytes))     # output

    def build_call(single_buffer_consts):
        def const_spec(shape, imap):
            # Constant-index blocks are DMA'd once; single-buffer them when the
            # installed JAX supports pipeline_mode (halves resident weight VMEM).
            if single_buffer_consts:
                return pl.BlockSpec(shape, imap, pipeline_mode=pl.Buffered(1))
            return pl.BlockSpec(shape, imap)

        if use_resident:
            grid_spec = pltpu.PrefetchScalarGridSpec(
                num_scalar_prefetch=0,
                grid=(n_m,),
                in_specs=[
                    pl.BlockSpec((tm, D_pad), lambda i: (i, 0)),     # x tile
                    const_spec((D_pad, H_pad), lambda i: (0, 0)),    # w1 (resident)
                    const_spec((1, H_pad), lambda i: (0, 0)),        # b1
                    const_spec((H_pad, D_pad), lambda i: (0, 0)),    # w2 (resident)
                    const_spec((1, D_pad), lambda i: (0, 0)),        # b2
                ],
                out_specs=pl.BlockSpec((tm, D_pad), lambda i: (i, 0)),
            )
            kernel = ffn_resident_kernel
        else:
            grid_spec = pltpu.PrefetchScalarGridSpec(
                num_scalar_prefetch=0,
                grid=(n_m, H_pad // th),
                in_specs=[
                    pl.BlockSpec((tm, D_pad), lambda i, h: (i, 0)),  # x tile
                    pl.BlockSpec((D_pad, th), lambda i, h: (0, h)),  # w1 hidden slice
                    pl.BlockSpec((1, th), lambda i, h: (0, h)),      # b1 hidden slice
                    pl.BlockSpec((th, D_pad), lambda i, h: (h, 0)),  # w2 hidden slice
                    const_spec((1, D_pad), lambda i, h: (0, 0)),     # b2 (constant)
                ],
                out_specs=pl.BlockSpec((tm, D_pad), lambda i, h: (i, 0)),
                scratch_shapes=[pltpu.VMEM((tm, D_pad), jnp.float32)],
            )
            kernel = ffn_streamed_kernel

        return pl.pallas_call(
            kernel,
            out_shape=jax.ShapeDtypeStruct((M_pad, D_pad), out_dtype),
            grid_spec=grid_spec,
            compiler_params=compiler_params,
            cost_estimate=cost,
        )

    try:
        out2 = build_call(True)(x2, w1p, b1p, w2p, b2p)
    except Exception:
        # pl.Buffered(1) / pipeline_mode unsupported -> retry with default buffering.
        out2 = build_call(False)(x2, w1p, b1p, w2p, b2p)

    if (M_pad, D_pad) != (M, D):
        out2 = out2[:M, :D]
    return out2.reshape(*lead_shape, D)


def feedforward_ref(x, w1, b1, w2, b2):
    h = jnp.dot(x, w1) + b1
    h = h * jax.nn.sigmoid(h)
    return jnp.dot(h, w2) + b2


if __name__ == "__main__":
    # Small shapes consistent with a ViT FeedForward: (batch, seq, dim), hidden.
    B, S, D, Hd = 2, 8, 16, 32

    key = jax.random.PRNGKey(0)
    kx, k1, k2, k3, k4 = jax.random.split(key, 5)

    x = jax.random.normal(kx, (B, S, D), dtype=jnp.float32)
    # Deterministic synthetic parameters (nn.Linear weights, pre-transposed).
    w1 = jax.random.normal(k1, (D, Hd), dtype=jnp.float32) * 0.1
    b1 = jax.random.normal(k2, (Hd,), dtype=jnp.float32) * 0.1
    w2 = jax.random.normal(k3, (Hd, D), dtype=jnp.float32) * 0.1
    b2 = jax.random.normal(k4, (D,), dtype=jnp.float32) * 0.1

    params = prepare_ffn_params(w1, b1, w2, b2)   # one-time weight pad + bf16 cast
    out = feedforward(x, params)
    out = jax.block_until_ready(out)

    ref = feedforward_ref(x, w1, b1, w2, b2)
    assert out.shape == (B, S, D)
    # Tolerance accounts for bf16 matmul operands (f32 accumulation).
    assert jnp.allclose(out, ref, atol=2e-2, rtol=2e-2), "mismatch vs reference"

    # TODO(synk): Dropout with p > 0 (training mode) would need an RNG path
    # (pltpu.prng_seed / prng_random_bits); module default p=0.0 is an identity.
    print("KERNEL_OK")
</pallas_src>

<mosaic_0001>
module attributes {stable_mosaic.version = 11 : i64} {
  func.func @ffn_resident_kernel(%arg0: i32, %arg1: memref<128x128xbf16, #tpu.memory_space<vmem>>, %arg2: memref<128x128xbf16, #tpu.memory_space<vmem>>, %arg3: memref<1x128xf32, #tpu.memory_space<vmem>>, %arg4: memref<128x128xbf16, #tpu.memory_space<vmem>>, %arg5: memref<1x128xf32, #tpu.memory_space<vmem>>, %arg6: memref<128x128xf32, #tpu.memory_space<vmem>>) attributes {dimension_semantics = [#tpu.dimension_semantics<parallel>], iteration_bounds = array<i64: 1>, scalar_prefetch = 0 : i64, scratch_operands = 0 : i64, tpu.core_type = #tpu.core_type<tc>, window_params = [{transform_indices = @transform_0, window_bounds = array<i64: 128, 128>}, {pipeline_mode = #tpu.pipeline_mode<synchronous>, transform_indices = @transform_1, window_bounds = array<i64: 128, 128>}, {pipeline_mode = #tpu.pipeline_mode<synchronous>, transform_indices = @transform_2, window_bounds = array<i64: 1, 128>}, {pipeline_mode = #tpu.pipeline_mode<synchronous>, transform_indices = @transform_3, window_bounds = array<i64: 128, 128>}, {pipeline_mode = #tpu.pipeline_mode<synchronous>, transform_indices = @transform_4, window_bounds = array<i64: 1, 128>}, {transform_indices = @transform_5, window_bounds = array<i64: 128, 128>}]} {
    %c0 = arith.constant 0 : index
    %c0_0 = arith.constant 0 : index
    %0 = vector.load %arg1[%c0, %c0_0] : memref<128x128xbf16, #tpu.memory_space<vmem>>, vector<128x128xbf16>
    %c0_1 = arith.constant 0 : index
    %c0_2 = arith.constant 0 : index
    %1 = vector.load %arg2[%c0_1, %c0_2] : memref<128x128xbf16, #tpu.memory_space<vmem>>, vector<128x128xbf16>
    %cst = arith.constant dense<0.000000e+00> : vector<128x128xf32>
    %2 = tpu.matmul %0, %1, %cst {dimension_numbers = #tpu.dot_dimension_numbers<[1], [0], [0], [1], [0, 0, 1, 1], [], []>} : vector<128x128xbf16>, vector<128x128xbf16>, vector<128x128xf32> -> vector<128x128xf32>
    %c0_3 = arith.constant 0 : index
    %c0_4 = arith.constant 0 : index
    %3 = vector.load %arg3[%c0_3, %c0_4] : memref<1x128xf32, #tpu.memory_space<vmem>>, vector<1x128xf32>
    %4 = vector.broadcast %3 : vector<1x128xf32> to vector<128x128xf32>
    %5 = arith.addf %2, %4 : vector<128x128xf32>
    %6 = arith.negf %5 : vector<128x128xf32>
    %7 = math.exp %6 : vector<128x128xf32>
    %cst_5 = arith.constant 1.000000e+00 : f32
    %8 = vector.broadcast %cst_5 : f32 to vector<128x128xf32>
    %9 = arith.addf %8, %7 : vector<128x128xf32>
    %10 = arith.divf %8, %9 : vector<128x128xf32>
    %11 = arith.mulf %5, %10 : vector<128x128xf32>
    %12 = arith.truncf %11 : vector<128x128xf32> to vector<128x128xbf16>
    %c0_6 = arith.constant 0 : index
    %c0_7 = arith.constant 0 : index
    %13 = vector.load %arg4[%c0_6, %c0_7] : memref<128x128xbf16, #tpu.memory_space<vmem>>, vector<128x128xbf16>
    %cst_8 = arith.constant dense<0.000000e+00> : vector<128x128xf32>
    %14 = tpu.matmul %12, %13, %cst_8 {dimension_numbers = #tpu.dot_dimension_numbers<[1], [0], [0], [1], [0, 0, 1, 1], [], []>} : vector<128x128xbf16>, vector<128x128xbf16>, vector<128x128xf32> -> vector<128x128xf32>
    %c0_9 = arith.constant 0 : index
    %c0_10 = arith.constant 0 : index
    %15 = vector.load %arg5[%c0_9, %c0_10] : memref<1x128xf32, #tpu.memory_space<vmem>>, vector<1x128xf32>
    %16 = vector.broadcast %15 : vector<1x128xf32> to vector<128x128xf32>
    %17 = arith.addf %14, %16 : vector<128x128xf32>
    %c0_11 = arith.constant 0 : index
    %c0_12 = arith.constant 0 : index
    %18 = vector.load %arg6[%c0_11, %c0_12] : memref<128x128xf32, #tpu.memory_space<vmem>>, vector<128x128xf32>
    tpu.vector_store %arg6[%c0_11, %c0_12], %17 {strides = array<i32>} : memref<128x128xf32, #tpu.memory_space<vmem>>, vector<128x128xf32>,
    return
  }
  func.func @transform_0(%arg0: i32) -> (i32, i32) {
    %c0_i32 = arith.constant 0 : i32
    %c0_i32_0 = arith.constant 0 : i32
    return %arg0, %c0_i32 : i32, i32
  }
  func.func @transform_1(%arg0: i32) -> (i32, i32) {
    %c0_i32 = arith.constant 0 : i32
    %c0_i32_0 = arith.constant 0 : i32
    %c0_i32_1 = arith.constant 0 : i32
    return %c0_i32, %c0_i32_0 : i32, i32
  }
  func.func @transform_2(%arg0: i32) -> (i32, i32) {
    %c0_i32 = arith.constant 0 : i32
    %c0_i32_0 = arith.constant 0 : i32
    %c0_i32_1 = arith.constant 0 : i32
    return %c0_i32, %c0_i32_0 : i32, i32
  }
  func.func @transform_3(%arg0: i32) -> (i32, i32) {
    %c0_i32 = arith.constant 0 : i32
    %c0_i32_0 = arith.constant 0 : i32
    %c0_i32_1 = arith.constant 0 : i32
    return %c0_i32, %c0_i32_0 : i32, i32
  }
  func.func @transform_4(%arg0: i32) -> (i32, i32) {
    %c0_i32 = arith.constant 0 : i32
    %c0_i32_0 = arith.constant 0 : i32
    %c0_i32_1 = arith.constant 0 : i32
    return %c0_i32, %c0_i32_0 : i32, i32
  }
  func.func @transform_5(%arg0: i32) -> (i32, i32) {
    %c0_i32 = arith.constant 0 : i32
    %c0_i32_0 = arith.constant 0 : i32
    return %arg0, %c0_i32 : i32, i32
  }
}

module attributes {stable_mosaic.version = 11 : i64} {
  func.func @ffn_resident_kernel(%arg0: i32, %arg1: memref<128x128xbf16, #tpu.memory_space<vmem>>, %arg2: memref<128x128xbf16, #tpu.memory_space<vmem>>, %arg3: memref<1x128xf32, #tpu.memory_space<vmem>>, %arg4: memref<128x128xbf16, #tpu.memory_space<vmem>>, %arg5: memref<1x128xf32, #tpu.memory_space<vmem>>, %arg6: memref<128x128xf32, #tpu.memory_space<vmem>>) attributes {dimension_semantics = [#tpu.dimension_semantics<parallel>], iteration_bounds = array<i64: 1>, scalar_prefetch = 0 : i64, scratch_operands = 0 : i64, tpu.core_type = #tpu.core_type<tc>, window_params = [{transform_indices = @transform_0, window_bounds = array<i64: 128, 128>}, {pipeline_mode = #tpu.pipeline_mode<synchronous>, transform_indices = @transform_1, window_bounds = array<i64: 128, 128>}, {pipeline_mode = #tpu.pipeline_mode<synchronous>, transform_indices = @transform_2, window_bounds = array<i64: 1, 128>}, {pipeline_mode = #tpu.pipeline_mode<synchronous>, transform_indices = @transform_3, window_bounds = array<i64: 128, 128>}, {pipeline_mode = #tpu.pipeline_mode<synchronous>, transform_indices = @transform_4, window_bounds = array<i64: 1, 128>}, {transform_indices = @transform_5, window_bounds = array<i64: 128, 128>}]} {
    %c0 = arith.constant 0 : index
    %c0_0 = arith.constant 0 : index
    %0 = vector.load %arg1[%c0, %c0_0] : memref<128x128xbf16, #tpu.memory_space<vmem>>, vector<128x128xbf16>
    %c0_1 = arith.constant 0 : index
    %c0_2 = arith.constant 0 : index
    %1 = vector.load %arg2[%c0_1, %c0_2] : memref<128x128xbf16, #tpu.memory_space<vmem>>, vector<128x128xbf16>
    %cst = arith.constant dense<0.000000e+00> : vector<128x128xf32>
    %2 = tpu.matmul %0, %1, %cst {dimension_numbers = #tpu.dot_dimension_numbers<[1], [0], [0], [1], [0, 0, 1, 1], [], []>} : vector<128x128xbf16>, vector<128x128xbf16>, vector<128x128xf32> -> vector<128x128xf32>
    %c0_3 = arith.constant 0 : index
    %c0_4 = arith.constant 0 : index
    %3 = vector.load %arg3[%c0_3, %c0_4] : memref<1x128xf32, #tpu.memory_space<vmem>>, vector<1x128xf32>
    %4 = vector.broadcast %3 : vector<1x128xf32> to vector<128x128xf32>
    %5 = arith.addf %2, %4 : vector<128x128xf32>
    %6 = arith.negf %5 : vector<128x128xf32>
    %7 = math.exp %6 : vector<128x128xf32>
    %cst_5 = arith.constant 1.000000e+00 : f32
    %8 = vector.broadcast %cst_5 : f32 to vector<128x128xf32>
    %9 = arith.addf %8, %7 : vector<128x128xf32>
    %10 = arith.divf %8, %9 : vector<128x128xf32>
    %11 = arith.mulf %5, %10 : vector<128x128xf32>
    %12 = arith.truncf %11 : vector<128x128xf32> to vector<128x128xbf16>
    %c0_6 = arith.constant 0 : index
    %c0_7 = arith.constant 0 : index
    %13 = vector.load %arg4[%c0_6, %c0_7] : memref<128x128xbf16, #tpu.memory_space<vmem>>, vector<128x128xbf16>
    %cst_8 = arith.constant dense<0.000000e+00> : vector<128x128xf32>
    %14 = tpu.matmul %12, %13, %cst_8 {dimension_numbers = #tpu.dot_dimension_numbers<[1], [0], [0], [1], [0, 0, 1, 1], [], []>} : vector<128x128xbf16>, vector<128x128xbf16>, vector<128x128xf32> -> vector<128x128xf32>
    %c0_9 = arith.constant 0 : index
    %c0_10 = arith.constant 0 : index
    %15 = vector.load %arg5[%c0_9, %c0_10] : memref<1x128xf32, #tpu.memory_space<vmem>>, vector<1x128xf32>
    %16 = vector.broadcast %15 : vector<1x128xf32> to vector<128x128xf32>
    %17 = arith.addf %14, %16 : vector<128x128xf32>
    %c0_11 = arith.constant 0 : index
    %c0_12 = arith.constant 0 : index
    %18 = vector.load %arg6[%c0_11, %c0_12] : memref<128x128xf32, #tpu.memory_space<vmem>>, vector<128x128xf32>
    tpu.vector_store %arg6[%c0_11, %c0_12], %17 {strides = array<i32>} : memref<128x128xf32, #tpu.memory_space<vmem>>, vector<128x128xf32>,
    return
  }
  func.func @transform_0(%arg0: i32) -> (i32, i32) {
    %c0_i32 = arith.constant 0 : i32
    %c0_i32_0 = arith.constant 0 : i32
    return %arg0, %c0_i32 : i32, i32
  }
  func.func @transform_1(%arg0: i32) -> (i32, i32) {
    %c0_i32 = arith.constant 0 : i32
    %c0_i32_0 = arith.constant 0 : i32
    %c0_i32_1 = arith.constant 0 : i32
    return %c0_i32, %c0_i32_0 : i32, i32
  }
  func.func @transform_2(%arg0: i32) -> (i32, i32) {
    %c0_i32 = arith.constant 0 : i32
    %c0_i32_0 = arith.constant 0 : i32
    %c0_i32_1 = arith.constant 0 : i32
    return %c0_i32, %c0_i32_0 : i32, i32
  }
  func.func @transform_3(%arg0: i32) -> (i32, i32) {
    %c0_i32 = arith.constant 0 : i32
    %c0_i32_0 = arith.constant 0 : i32
    %c0_i32_1 = arith.constant 0 : i32
    return %c0_i32, %c0_i32_0 : i32, i32
  }
  func.func @transform_4(%arg0: i32) -> (i32, i32) {
    %c0_i32 = arith.constant 0 : i32
    %c0_i32_0 = arith.constant 0 : i32
    %c0_i32_1 = arith.constant 0 : i32
    return %c0_i32, %c0_i32_0 : i32, i32
  }
  func.func @transform_5(%arg0: i32) -> (i32, i32) {
    %c0_i32 = arith.constant 0 : i32
    %c0_i32_0 = arith.constant 0 : i32
    return %arg0, %c0_i32 : i32, i32
  }
}

</mosaic_0001>

<llo_original>
// kernel: tpu_custom_call.1
$region0: #{tpu_custom_call.1}
  #allocation0 [shape = 'u32[]', space=smem, size = 0x4, offset = 0x4, fixed_abs, tag = 'smem constant byte address 0x4 - core index']
  #allocation1 [shape = 'u32[144,128]{1,0:T(1,128)}', space=vmem, size = 0x12000, scoped, tag = 'internal scratch']
  %s0 = inlined_call_operand.hbm [shape: bf16[128,128], index: 0, kind: input, shape index: {}]
  %s1 = inlined_call_operand.hbm [shape: bf16[128,128], index: 1, kind: input, shape index: {}]
  %s2 = inlined_call_operand.vmem [shape: f32[1,128], index: 2, kind: input, shape index: {}]
  %s3 = inlined_call_operand.hbm [shape: bf16[128,128], index: 3, kind: input, shape index: {}]
  %s4 = inlined_call_operand.vmem [shape: f32[1,128], index: 4, kind: input, shape index: {}]
  %s5 = inlined_call_operand.hbm [shape: f32[128,128], index: 5, kind: output, shape index: {}]
  %s6 = sld [smem:[#allocation0]]
  $region42: #{tpu_custom_call.1} parent=0
    _
  %s8 = ssub.s32 1, %s6
  %s9 = scalar_select 0, %s8, %s6
  $region1: #{tpu_custom_call.1} parent=0
    #allocation2 [shape = 'u8[32768]{0}', space=vmem, size = 0x8000, scoped, tag = 'input window, operand 0, single buffered']
    #allocation3 [shape = 's32[1]{0}', space=sflag, size = 0x4, scoped, tag = 'scoped memory for tpu_custom_call.1']
    #allocation4 [shape = 's32[1]{0}', space=sflag, size = 0x4, scoped, tag = 'scoped memory for tpu_custom_call.1']
    #allocation5 [shape = 'u8[32768]{0}', space=vmem, size = 0x8000, scoped, tag = 'input window, operand 1, single buffered']
    #allocation6 [shape = 's32[1]{0}', space=sflag, size = 0x4, scoped, tag = 'scoped memory for tpu_custom_call.1']
    #allocation7 [shape = 'u8[32768]{0}', space=vmem, size = 0x8000, scoped, tag = 'input window, operand 3, single buffered']
    #allocation8 [shape = 'u8[65536]{0}', space=vmem, size = 0x10000, scoped, tag = 'output window, operand 0, single buffered']
    %10 = vsyncpa [#allocation3], 0
    %11 = vsyncpa [#allocation6], 0
    %12 = vsyncpa [#allocation4], 0
    // Predicated region
    $region2: #{tpu_custom_call.1} parent=1 // pred_check
      _
    $region3: #{tpu_custom_call.1} parent=1 // pred_check_branch
      %14 = sbr.rel (0) target = $region5
    $region4: #{tpu_custom_call.1} parent=1 // pred_region
      %s16 = ssub.s32 1024, 1024
      %17 = vsyncadd [#allocation3], %s16
      %s18 = sshll.u32 [#allocation2], 4
      %s19 = int_to_ptr.vmem [resolvable:$true] %s18
      %24 = dma.hbm_to_vmem [thread:$0]  %s0, 1024, %s19, [#allocation3], 64, 64, 4
    $region5: #{tpu_custom_call.1} parent=1 // pred_fallthru
      _
    // Predicated region
    $region6: #{tpu_custom_call.1} parent=1 // pred_check
      _
    $region7: #{tpu_custom_call.1} parent=1 // pred_check_branch
      %26 = sbr.rel (0) target = $region9
    $region8: #{tpu_custom_call.1} parent=1 // pred_region
      %s28 = ssub.s32 1024, 1024
      %29 = vsyncadd [#allocation6], %s28
      %s30 = sshll.u32 [#allocation5], 4
      %s31 = int_to_ptr.vmem [resolvable:$true] %s30
      %36 = dma.hbm_to_vmem [thread:$0]  %s1, 1024, %s31, [#allocation6], 64, 64, 4
    $region9: #{tpu_custom_call.1} parent=1 // pred_fallthru
      _
    // Predicated region
    $region10: #{tpu_custom_call.1} parent=1 // pred_check
      _
    $region11: #{tpu_custom_call.1} parent=1 // pred_check_branch
      %38 = sbr.rel (0) target = $region13
    $region12: #{tpu_custom_call.1} parent=1 // pred_region
      _
    $region13: #{tpu_custom_call.1} parent=1 // pred_fallthru
      _
    // Predicated region
    $region14: #{tpu_custom_call.1} parent=1 // pred_check
      _
    $region15: #{tpu_custom_call.1} parent=1 // pred_check_branch
      %40 = sbr.rel (0) target = $region17
    $region16: #{tpu_custom_call.1} parent=1 // pred_region
      %s42 = ssub.s32 1024, 1024
      %43 = vsyncadd [#allocation6], %s42
      %s44 = sshll.u32 [#allocation7], 4
      %s45 = int_to_ptr.vmem [resolvable:$true] %s44
      %50 = dma.hbm_to_vmem [thread:$0]  %s3, 1024, %s45, [#allocation6], 64, 64, 4
    $region17: #{tpu_custom_call.1} parent=1 // pred_fallthru
      _
    // Predicated region
    $region18: #{tpu_custom_call.1} parent=1 // pred_check
      _
    $region19: #{tpu_custom_call.1} parent=1 // pred_check_branch
      %52 = sbr.rel (0) target = $region21
    $region20: #{tpu_custom_call.1} parent=1 // pred_region
      _
    $region21: #{tpu_custom_call.1} parent=1 // pred_fallthru
      _
    // Predicated region
    $region22: #{tpu_custom_call.1} parent=1 // pred_check
      _
    $region23: #{tpu_custom_call.1} parent=1 // pred_check_branch
      %54 = sbr.rel (0) target = $region25
    $region24: #{tpu_custom_call.1} parent=1 // pred_region
      %55 = dma.done [#allocation3], 1024
    $region25: #{tpu_custom_call.1} parent=1 // pred_fallthru
      _
    // Predicated region
    $region26: #{tpu_custom_call.1} parent=1 // pred_check
      _
    $region27: #{tpu_custom_call.1} parent=1 // pred_check_branch
      %57 = sbr.rel (0) target = $region29
    $region28: #{tpu_custom_call.1} parent=1 // pred_region
      %58 = dma.done [#allocation6], 1024
    $region29: #{tpu_custom_call.1} parent=1 // pred_fallthru
      _
    // Predicated region
    $region30: #{tpu_custom_call.1} parent=1 // pred_check
      _
    $region31: #{tpu_custom_call.1} parent=1 // pred_check_branch
      %60 = sbr.rel (0) target = $region33
    $region32: #{tpu_custom_call.1} parent=1 // pred_region
      %61 = dma.done [#allocation6], 1024
    $region33: #{tpu_custom_call.1} parent=1 // pred_fallthru
      _
    %v63 = vld [vmem:[#allocation2] sm:$0xf]
    %v64 = vld [vmem:[#allocation2 + $0x4] sm:$0xf]
    %v65 = vld [vmem:[#allocation2 + $0x8] sm:$0xf]
    %v66 = vld [vmem:[#allocation2 + $0xc] sm:$0xf]
    %v67 = vld [vmem:[#allocation2 + $0x10] sm:$0xf]
    %v68 = vld [vmem:[#allocation2 + $0x14] sm:$0xf]
    %v69 = vld [vmem:[#allocation2 + $0x18] sm:$0xf]
    %v70 = vld [vmem:[#allocation2 + $0x1c] sm:$0xf]
    %v71 = vld [vmem:[#allocation2 + $0x20] sm:$0xf]
    %v72 = vld [vmem:[#allocation2 + $0x24] sm:$0xf]
    %v73 = vld [vmem:[#allocation2 + $0x28] sm:$0xf]
    %v74 = vld [vmem:[#allocation2 + $0x2c] sm:$0xf]
    %v75 = vld [vmem:[#allocation2 + $0x30] sm:$0xf]
    %v76 = vld [vmem:[#allocation2 + $0x34] sm:$0xf]
    %v77 = vld [vmem:[#allocation2 + $0x38] sm:$0xf]
    %v78 = vld [vmem:[#allocation2 + $0x3c] sm:$0xf]
    %v79 = vld [vmem:[#allocation5] sm:$0xf]
    %v80 = vld [vmem:[#allocation5 + $0x4] sm:$0xf]
    %v81 = vld [vmem:[#allocation5 + $0x8] sm:$0xf]
    %v82 = vld [vmem:[#allocation5 + $0xc] sm:$0xf]
    %v83 = vld [vmem:[#allocation5 + $0x10] sm:$0xf]
    %v84 = vld [vmem:[#allocation5 + $0x14] sm:$0xf]
    %v85 = vld [vmem:[#allocation5 + $0x18] sm:$0xf]
    %v86 = vld [vmem:[#allocation5 + $0x1c] sm:$0xf]
    %v87 = vld [vmem:[#allocation5 + $0x20] sm:$0xf]
    %v88 = vld [vmem:[#allocation5 + $0x24] sm:$0xf]
    %v89 = vld [vmem:[#allocation5 + $0x28] sm:$0xf]
    %v90 = vld [vmem:[#allocation5 + $0x2c] sm:$0xf]
    %v91 = vld [vmem:[#allocation5 + $0x30] sm:$0xf]
    %v92 = vld [vmem:[#allocation5 + $0x34] sm:$0xf]
    %v93 = vld [vmem:[#allocation5 + $0x38] sm:$0xf]
    %v94 = vld [vmem:[#allocation5 + $0x3c] sm:$0xf]
    %v95 = vld [vmem:[%s2] sm:$0x1]
    %v97 = vlaneseq
    %v98 = vshrl.u32 %v97, 7
    %v99 = vsub.s32 0, %v98
    %v100 = vrot.slane %v95, %v99
    %v118 = vunpack.c.l.b16 %v63
    %v119 = vunpack.c.l.b16 %v64
    %v120 = vunpack.c.l.b16 %v65
    %v121 = vunpack.c.l.b16 %v66
    %v122 = vunpack.c.l.b16 %v67
    %v123 = vunpack.c.l.b16 %v68
    %v124 = vunpack.c.l.b16 %v69
    %v125 = vunpack.c.l.b16 %v70
    %v126 = vunpack.c.l.b16 %v71
    %v127 = vunpack.c.l.b16 %v72
    %v128 = vunpack.c.l.b16 %v73
    %v129 = vunpack.c.l.b16 %v74
    %v130 = vunpack.c.l.b16 %v75
    %v131 = vunpack.c.l.b16 %v76
    %v132 = vunpack.c.l.b16 %v77
    %v133 = vunpack.c.l.b16 %v78
    %v134 = vpack.c.b16 %v119, %v118
    %v135 = vpack.c.b16 %v121, %v120
    %v136 = vpack.c.b16 %v123, %v122
    %v137 = vpack.c.b16 %v125, %v124
    %v138 = vpack.c.b16 %v127, %v126
    %v139 = vpack.c.b16 %v129, %v128
    %v140 = vpack.c.b16 %v131, %v130
    %v141 = vpack.c.b16 %v133, %v132
    %v166 = vunpack.c.l.b16 %v79
    %v167 = vunpack.c.l.b16 %v80
    %v168 = vunpack.c.l.b16 %v81
    %v169 = vunpack.c.l.b16 %v82
    %v170 = vunpack.c.l.b16 %v83
    %v171 = vunpack.c.l.b16 %v84
    %v172 = vunpack.c.l.b16 %v85
    %v173 = vunpack.c.l.b16 %v86
    %v174 = vunpack.c.l.b16 %v87
    %v175 = vunpack.c.l.b16 %v88
    %v176 = vunpack.c.l.b16 %v89
    %v177 = vunpack.c.l.b16 %v90
    %v178 = vunpack.c.l.b16 %v91
    %v179 = vunpack.c.l.b16 %v92
    %v180 = vunpack.c.l.b16 %v93
    %v181 = vunpack.c.l.b16 %v94
    %v182 = vpack.c.b16 %v167, %v166
    %v183 = vpack.c.b16 %v169, %v168
    %v184 = vpack.c.b16 %v171, %v170
    %v185 = vpack.c.b16 %v173, %v172
    %v186 = vpack.c.b16 %v175, %v174
    %v187 = vpack.c.b16 %v177, %v176
    %v188 = vpack.c.b16 %v179, %v178
    %v189 = vpack.c.b16 %v181, %v180
    %198 = vmatprep.subr.bf16.mxu0 0
    %199 = vmatpush1.bf16.msra.mxu0 %v182
    %200 = vmatprep.subr.bf16.mxu0 0
    %201 = vmatpush1.bf16.msra.mxu0 %v183
    %202 = vmatprep.subr.bf16.mxu0 0
    %203 = vmatpush1.bf16.msra.mxu0 %v184
    %204 = vmatprep.subr.bf16.mxu0 0
    %205 = vmatpush1.bf16.msra.mxu0 %v185
    %206 = vmatprep.subr.bf16.mxu0 0
    %207 = vmatpush1.bf16.msra.mxu0 %v186
    %208 = vmatprep.subr.bf16.mxu0 0
    %209 = vmatpush1.bf16.msra.mxu0 %v187
    %210 = vmatprep.subr.bf16.mxu0 0
    %211 = vmatpush1.bf16.msra.mxu0 %v188
    %212 = vmatprep.subr.bf16.mxu0 0
    %213 = vmatpush1.bf16.msra.mxu0 %v189
    %214 = vmatprep.subr.bf16.mxu0 0
    %215 = vmatpush1.bf16.msra.mxu0 0
    %216 = vmatprep.subr.bf16.mxu0 0
    %217 = vmatpush1.bf16.msra.mxu0 0
    %218 = vmatprep.subr.bf16.mxu0 0
    %219 = vmatpush1.bf16.msra.mxu0 0
    %220 = vmatprep.subr.bf16.mxu0 0
    %221 = vmatpush1.bf16.msra.mxu0 0
    %222 = vmatprep.subr.bf16.mxu0 0
    %223 = vmatpush1.bf16.msra.mxu0 0
    %224 = vmatprep.subr.bf16.mxu0 0
    %225 = vmatpush1.bf16.msra.mxu0 0
    %226 = vmatprep.subr.bf16.mxu0 0
    %227 = vmatpush1.bf16.msra.mxu0 0
    %228 = vmatprep.subr.bf16.mxu0 0
    %229 = vmatpush1.bf16.msra.mxu0 0
    %230 = vmatprep.mubr.bf16.mxu0 0
    %231 = vmatmul.mubr.bf16.gmra.mrb[0].mxu0 %v134
    %v232 = vpop.f32.mrb[0].mxu0
    %v233 = vadd.f32 %v100, %v232
    %v234 = vpop.f32.mrb[0].mxu0
    %v235 = vpop.f32.mrb[0].mxu0
    %v236 = vadd.f32 %v100, %v235
    %v237 = vpop.f32.mrb[0].mxu0
    %238 = vmatprep.mubr.bf16.mxu0 0
    %239 = vmatmul.mubr.bf16.gmra.mrb[0].mxu0 %v135
    %v240 = vpop.f32.mrb[0].mxu0
    %v241 = vadd.f32 %v100, %v240
    %v242 = vpop.f32.mrb[0].mxu0
    %v243 = vpop.f32.mrb[0].mxu0
    %v244 = vadd.f32 %v100, %v243
    %v245 = vpop.f32.mrb[0].mxu0
    %246 = vmatprep.mubr.bf16.mxu0 0
    %247 = vmatmul.mubr.bf16.gmra.mrb[0].mxu0 %v136
    %v248 = vpop.f32.mrb[0].mxu0
    %v249 = vadd.f32 %v100, %v248
    %v250 = vpop.f32.mrb[0].mxu0
    %v251 = vpop.f32.mrb[0].mxu0
    %v252 = vadd.f32 %v100, %v251
    %v253 = vpop.f32.mrb[0].mxu0
    %254 = vmatprep.mubr.bf16.mxu0 0
    %255 = vmatmul.mubr.bf16.gmra.mrb[0].mxu0 %v137
    %v256 = vpop.f32.mrb[0].mxu0
    %v257 = vadd.f32 %v100, %v256
    %v258 = vpop.f32.mrb[0].mxu0
    %v259 = vpop.f32.mrb[0].mxu0
    %v260 = vadd.f32 %v100, %v259
    %v261 = vpop.f32.mrb[0].mxu0
    %262 = vmatprep.mubr.bf16.mxu0 0
    %263 = vmatmul.mubr.bf16.gmra.mrb[0].mxu0 %v138
    %v264 = vpop.f32.mrb[0].mxu0
    %v265 = vadd.f32 %v100, %v264
    %v266 = vpop.f32.mrb[0].mxu0
    %v267 = vpop.f32.mrb[0].mxu0
    %v268 = vadd.f32 %v100, %v267
    %v269 = vpop.f32.mrb[0].mxu0
    %270 = vmatprep.mubr.bf16.mxu0 0
    %271 = vmatmul.mubr.bf16.gmra.mrb[0].mxu0 %v139
    %v272 = vpop.f32.mrb[0].mxu0
    %v273 = vadd.f32 %v100, %v272
    %v274 = vpop.f32.mrb[0].mxu0
    %v275 = vpop.f32.mrb[0].mxu0
    %v276 = vadd.f32 %v100, %v275
    %v277 = vpop.f32.mrb[0].mxu0
    %278 = vmatprep.mubr.bf16.mxu0 0
    %279 = vmatmul.mubr.bf16.gmra.mrb[0].mxu0 %v140
    %v280 = vpop.f32.mrb[0].mxu0
    %v281 = vadd.f32 %v100, %v280
    %v282 = vpop.f32.mrb[0].mxu0
    %v283 = vpop.f32.mrb[0].mxu0
    %v284 = vadd.f32 %v100, %v283
    %v285 = vpop.f32.mrb[0].mxu0
    %286 = vmatprep.mubr.bf16.mxu0 0
    %287 = vmatmul.mubr.bf16.gmra.mrb[0].mxu0 %v141
    %v288 = vpop.f32.mrb[0].mxu0
    %v289 = vadd.f32 %v100, %v288
    %v290 = vpop.f32.mrb[0].mxu0
    %v291 = vpop.f32.mrb[0].mxu0
    %v292 = vadd.f32 %v100, %v291
    %v293 = vpop.f32.mrb[0].mxu0
    %294 = vdwg.mxu0
    %v295 = vxor.u32 %v233, 2147483648
    %v296 = vxor.u32 %v236, 2147483648
    %v297 = vxor.u32 %v241, 2147483648
    %v298 = vxor.u32 %v244, 2147483648
    %v299 = vxor.u32 %v249, 2147483648
    %v300 = vxor.u32 %v252, 2147483648
    %v301 = vxor.u32 %v257, 2147483648
    %v302 = vxor.u32 %v260, 2147483648
    %v303 = vxor.u32 %v265, 2147483648
    %v304 = vxor.u32 %v268, 2147483648
    %v305 = vxor.u32 %v273, 2147483648
    %v306 = vxor.u32 %v276, 2147483648
    %v307 = vxor.u32 %v281, 2147483648
    %v308 = vxor.u32 %v284, 2147483648
    %v309 = vxor.u32 %v289, 2147483648
    %v310 = vxor.u32 %v292, 2147483648
    %v311 = vmul.f32 %v295, 1.442695
    %v312 = vpow.pop %v311
    %v313 = vmul.f32 %v296, 1.442695
    %v314 = vpow.pop %v313
    %v315 = vmul.f32 %v297, 1.442695
    %v316 = vpow.pop %v315
    %v317 = vmul.f32 %v298, 1.442695
    %v318 = vpow.pop %v317
    %v319 = vmul.f32 %v299, 1.442695
    %v320 = vpow.pop %v319
    %v321 = vmul.f32 %v300, 1.442695
    %v322 = vpow.pop %v321
    %v323 = vmul.f32 %v301, 1.442695
    %v324 = vpow.pop %v323
    %v325 = vmul.f32 %v302, 1.442695
    %v326 = vpow.pop %v325
    %v327 = vmul.f32 %v303, 1.442695
    %v328 = vpow.pop %v327
    %v329 = vmul.f32 %v304, 1.442695
    %v330 = vpow.pop %v329
    %v331 = vmul.f32 %v305, 1.442695
    %v332 = vpow.pop %v331
    %v333 = vmul.f32 %v306, 1.442695
    %v334 = vpow.pop %v333
    %v335 = vmul.f32 %v307, 1.442695
    %v336 = vpow.pop %v335
    %v337 = vmul.f32 %v308, 1.442695
    %v338 = vpow.pop %v337
    %v339 = vmul.f32 %v309, 1.442695
    %v340 = vpow.pop %v339
    %v341 = vmul.f32 %v310, 1.442695
    %v342 = vpow.pop %v341
    %v343 = vadd.f32 %v312, 1.0
    %v344 = vadd.f32 %v314, 1.0
    %v345 = vadd.f32 %v316, 1.0
    %v346 = vadd.f32 %v318, 1.0
    %v347 = vadd.f32 %v320, 1.0
    %v348 = vadd.f32 %v322, 1.0
    %v349 = vadd.f32 %v324, 1.0
    %v350 = vadd.f32 %v326, 1.0
    %v351 = vadd.f32 %v328, 1.0
    %v352 = vadd.f32 %v330, 1.0
    %v353 = vadd.f32 %v332, 1.0
    %v354 = vadd.f32 %v334, 1.0
    %v355 = vadd.f32 %v336, 1.0
    %v356 = vadd.f32 %v338, 1.0
    %v357 = vadd.f32 %v340, 1.0
    %v358 = vadd.f32 %v342, 1.0
    %v359 = vrcp.pop %v343
    %v360 = vmul.f32 1.0, %v359
    %v361 = vrcp.pop %v344
    %v362 = vmul.f32 1.0, %v361
    %v363 = vrcp.pop %v345
    %v364 = vmul.f32 1.0, %v363
    %v365 = vrcp.pop %v346
    %v366 = vmul.f32 1.0, %v365
    %v367 = vrcp.pop %v347
    %v368 = vmul.f32 1.0, %v367
    %v369 = vrcp.pop %v348
    %v370 = vmul.f32 1.0, %v369
    %v371 = vrcp.pop %v349
    %v372 = vmul.f32 1.0, %v371
    %v373 = vrcp.pop %v350
    %v374 = vmul.f32 1.0, %v373
    %v375 = vrcp.pop %v351
    %v376 = vmul.f32 1.0, %v375
    %v377 = vrcp.pop %v352
    %v378 = vmul.f32 1.0, %v377
    %v379 = vrcp.pop %v353
    %v380 = vmul.f32 1.0, %v379
    %v381 = vrcp.pop %v354
    %v382 = vmul.f32 1.0, %v381
    %v383 = vrcp.pop %v355
    %v384 = vmul.f32 1.0, %v383
    %v385 = vrcp.pop %v356
    %v386 = vmul.f32 1.0, %v385
    %v387 = vrcp.pop %v357
    %v388 = vmul.f32 1.0, %v387
    %v389 = vrcp.pop %v358
    %v390 = vmul.f32 1.0, %v389
    %v391 = vmul.f32 %v233, %v360
    %v392 = vmul.f32 %v236, %v362
    %v393 = vmul.f32 %v241, %v364
    %v394 = vmul.f32 %v244, %v366
    %v395 = vmul.f32 %v249, %v368
    %v396 = vmul.f32 %v252, %v370
    %v397 = vmul.f32 %v257, %v372
    %v398 = vmul.f32 %v260, %v374
    %v399 = vmul.f32 %v265, %v376
    %v400 = vmul.f32 %v268, %v378
    %v401 = vmul.f32 %v273, %v380
    %v402 = vmul.f32 %v276, %v382
    %v403 = vmul.f32 %v281, %v384
    %v404 = vmul.f32 %v284, %v386
    %v405 = vmul.f32 %v289, %v388
    %v406 = vmul.f32 %v292, %v390
    %v407 = vpack.c.bf16 %v392, %v391
    %v408 = vpack.c.bf16 %v394, %v393
    %v409 = vpack.c.bf16 %v396, %v395
    %v410 = vpack.c.bf16 %v398, %v397
    %v411 = vpack.c.bf16 %v400, %v399
    %v412 = vpack.c.bf16 %v402, %v401
    %v413 = vpack.c.bf16 %v404, %v403
    %v414 = vpack.c.bf16 %v406, %v405
    %v415 = vld [vmem:[#allocation7] sm:$0xf]
    %v416 = vld [vmem:[#allocation7 + $0x4] sm:$0xf]
    %v417 = vld [vmem:[#allocation7 + $0x8] sm:$0xf]
    %v418 = vld [vmem:[#allocation7 + $0xc] sm:$0xf]
    %v419 = vld [vmem:[#allocation7 + $0x10] sm:$0xf]
    %v420 = vld [vmem:[#allocation7 + $0x14] sm:$0xf]
    %v421 = vld [vmem:[#allocation7 + $0x18] sm:$0xf]
    %v422 = vld [vmem:[#allocation7 + $0x1c] sm:$0xf]
    %v423 = vld [vmem:[#allocation7 + $0x20] sm:$0xf]
    %v424 = vld [vmem:[#allocation7 + $0x24] sm:$0xf]
    %v425 = vld [vmem:[#allocation7 + $0x28] sm:$0xf]
    %v426 = vld [vmem:[#allocation7 + $0x2c] sm:$0xf]
    %v427 = vld [vmem:[#allocation7 + $0x30] sm:$0xf]
    %v428 = vld [vmem:[#allocation7 + $0x34] sm:$0xf]
    %v429 = vld [vmem:[#allocation7 + $0x38] sm:$0xf]
    %v430 = vld [vmem:[#allocation7 + $0x3c] sm:$0xf]
    %v431 = vld [vmem:[%s4] sm:$0x1]
    %v433 = vlaneseq
    %v434 = vshrl.u32 %v433, 7
    %v435 = vsub.s32 0, %v434
    %v436 = vrot.slane %v431, %v435
    %v454 = vunpack.c.l.b16 %v415
    %v455 = vunpack.c.l.b16 %v416
    %v456 = vunpack.c.l.b16 %v417
    %v457 = vunpack.c.l.b16 %v418
    %v458 = vunpack.c.l.b16 %v419
    %v459 = vunpack.c.l.b16 %v420
    %v460 = vunpack.c.l.b16 %v421
    %v461 = vunpack.c.l.b16 %v422
    %v462 = vunpack.c.l.b16 %v423
    %v463 = vunpack.c.l.b16 %v424
    %v464 = vunpack.c.l.b16 %v425
    %v465 = vunpack.c.l.b16 %v426
    %v466 = vunpack.c.l.b16 %v427
    %v467 = vunpack.c.l.b16 %v428
    %v468 = vunpack.c.l.b16 %v429
    %v469 = vunpack.c.l.b16 %v430
    %v470 = vpack.c.b16 %v455, %v454
    %v471 = vpack.c.b16 %v457, %v456
    %v472 = vpack.c.b16 %v459, %v458
    %v473 = vpack.c.b16 %v461, %v460
    %v474 = vpack.c.b16 %v463, %v462
    %v475 = vpack.c.b16 %v465, %v464
    %v476 = vpack.c.b16 %v467, %v466
    %v477 = vpack.c.b16 %v469, %v468
    %486 = vmatprep.subr.bf16.mxu0 0
    %487 = vmatpush1.bf16.msra.mxu0 %v470
    %488 = vmatprep.subr.bf16.mxu0 0
    %489 = vmatpush1.bf16.msra.mxu0 %v471
    %490 = vmatprep.subr.bf16.mxu0 0
    %491 = vmatpush1.bf16.msra.mxu0 %v472
    %492 = vmatprep.subr.bf16.mxu0 0
    %493 = vmatpush1.bf16.msra.mxu0 %v473
    %494 = vmatprep.subr.bf16.mxu0 0
    %495 = vmatpush1.bf16.msra.mxu0 %v474
    %496 = vmatprep.subr.bf16.mxu0 0
    %497 = vmatpush1.bf16.msra.mxu0 %v475
    %498 = vmatprep.subr.bf16.mxu0 0
    %499 = vmatpush1.bf16.msra.mxu0 %v476
    %500 = vmatprep.subr.bf16.mxu0 0
    %501 = vmatpush1.bf16.msra.mxu0 %v477
    %502 = vmatprep.subr.bf16.mxu0 0
    %503 = vmatpush1.bf16.msra.mxu0 0
    %504 = vmatprep.subr.bf16.mxu0 0
    %505 = vmatpush1.bf16.msra.mxu0 0
    %506 = vmatprep.subr.bf16.mxu0 0
    %507 = vmatpush1.bf16.msra.mxu0 0
    %508 = vmatprep.subr.bf16.mxu0 0
    %509 = vmatpush1.bf16.msra.mxu0 0
    %510 = vmatprep.subr.bf16.mxu0 0
    %511 = vmatpush1.bf16.msra.mxu0 0
    %512 = vmatprep.subr.bf16.mxu0 0
    %513 = vmatpush1.bf16.msra.mxu0 0
    %514 = vmatprep.subr.bf16.mxu0 0
    %515 = vmatpush1.bf16.msra.mxu0 0
    %516 = vmatprep.subr.bf16.mxu0 0
    %517 = vmatpush1.bf16.msra.mxu0 0
    %518 = vmatprep.mubr.bf16.mxu0 0
    %519 = vmatmul.mubr.bf16.gmra.mrb[0].mxu0 %v407
    %v520 = vpop.f32.mrb[0].mxu0
    %v521 = vadd.f32 %v436, %v520
    %v522 = vpop.f32.mrb[0].mxu0
    %v523 = vpop.f32.mrb[0].mxu0
    %v524 = vadd.f32 %v436, %v523
    %v525 = vpop.f32.mrb[0].mxu0
    %526 = vmatprep.mubr.bf16.mxu0 0
    %527 = vmatmul.mubr.bf16.gmra.mrb[0].mxu0 %v408
    %v528 = vpop.f32.mrb[0].mxu0
    %v529 = vadd.f32 %v436, %v528
    %v530 = vpop.f32.mrb[0].mxu0
    %v531 = vpop.f32.mrb[0].mxu0
    %v532 = vadd.f32 %v436, %v531
    %v533 = vpop.f32.mrb[0].mxu0
    %534 = vmatprep.mubr.bf16.mxu0 0
    %535 = vmatmul.mubr.bf16.gmra.mrb[0].mxu0 %v409
    %v536 = vpop.f32.mrb[0].mxu0
    %v537 = vadd.f32 %v436, %v536
    %v538 = vpop.f32.mrb[0].mxu0
    %v539 = vpop.f32.mrb[0].mxu0
    %v540 = vadd.f32 %v436, %v539
    %v541 = vpop.f32.mrb[0].mxu0
    %542 = vmatprep.mubr.bf16.mxu0 0
    %543 = vmatmul.mubr.bf16.gmra.mrb[0].mxu0 %v410
    %v544 = vpop.f32.mrb[0].mxu0
    %v545 = vadd.f32 %v436, %v544
    %v546 = vpop.f32.mrb[0].mxu0
    %v547 = vpop.f32.mrb[0].mxu0
    %v548 = vadd.f32 %v436, %v547
    %v549 = vpop.f32.mrb[0].mxu0
    %550 = vmatprep.mubr.bf16.mxu0 0
    %551 = vmatmul.mubr.bf16.gmra.mrb[0].mxu0 %v411
    %v552 = vpop.f32.mrb[0].mxu0
    %v553 = vadd.f32 %v436, %v552
    %v554 = vpop.f32.mrb[0].mxu0
    %v555 = vpop.f32.mrb[0].mxu0
    %v556 = vadd.f32 %v436, %v555
    %v557 = vpop.f32.mrb[0].mxu0
    %558 = vmatprep.mubr.bf16.mxu0 0
    %559 = vmatmul.mubr.bf16.gmra.mrb[0].mxu0 %v412
    %v560 = vpop.f32.mrb[0].mxu0
    %v561 = vadd.f32 %v436, %v560
    %v562 = vpop.f32.mrb[0].mxu0
    %v563 = vpop.f32.mrb[0].mxu0
    %v564 = vadd.f32 %v436, %v563
    %v565 = vpop.f32.mrb[0].mxu0
    %566 = vmatprep.mubr.bf16.mxu0 0
    %567 = vmatmul.mubr.bf16.gmra.mrb[0].mxu0 %v413
    %v568 = vpop.f32.mrb[0].mxu0
    %v569 = vadd.f32 %v436, %v568
    %v570 = vpop.f32.mrb[0].mxu0
    %v571 = vpop.f32.mrb[0].mxu0
    %v572 = vadd.f32 %v436, %v571
    %v573 = vpop.f32.mrb[0].mxu0
    %574 = vmatprep.mubr.bf16.mxu0 0
    %575 = vmatmul.mubr.bf16.gmra.mrb[0].mxu0 %v414
    %v576 = vpop.f32.mrb[0].mxu0
    %v577 = vadd.f32 %v436, %v576
    %v578 = vpop.f32.mrb[0].mxu0
    %v579 = vpop.f32.mrb[0].mxu0
    %v580 = vadd.f32 %v436, %v579
    %v581 = vpop.f32.mrb[0].mxu0
    %582 = vdwg.mxu0
    %583 = vst [vmem:[#allocation8] sm:$0xff] %v521
    %584 = vst [vmem:[#allocation8 + $0x8] sm:$0xff] %v524
    %585 = vst [vmem:[#allocation8 + $0x10] sm:$0xff] %v529
    %586 = vst [vmem:[#allocation8 + $0x18] sm:$0xff] %v532
    %587 = vst [vmem:[#allocation8 + $0x20] sm:$0xff] %v537
    %588 = vst [vmem:[#allocation8 + $0x28] sm:$0xff] %v540
    %589 = vst [vmem:[#allocation8 + $0x30] sm:$0xff] %v545
    %590 = vst [vmem:[#allocation8 + $0x38] sm:$0xff] %v548
    %591 = vst [vmem:[#allocation8 + $0x40] sm:$0xff] %v553
    %592 = vst [vmem:[#allocation8 + $0x48] sm:$0xff] %v556
    %593 = vst [vmem:[#allocation8 + $0x50] sm:$0xff] %v561
    %594 = vst [vmem:[#allocation8 + $0x58] sm:$0xff] %v564
    %595 = vst [vmem:[#allocation8 + $0x60] sm:$0xff] %v569
    %596 = vst [vmem:[#allocation8 + $0x68] sm:$0xff] %v572
    %597 = vst [vmem:[#allocation8 + $0x70] sm:$0xff] %v577
    %598 = vst [vmem:[#allocation8 + $0x78] sm:$0xff] %v580
    // Predicated region
    $region34: #{tpu_custom_call.1} parent=1 // pred_check
      _
    $region35: #{tpu_custom_call.1} parent=1 // pred_check_branch
      %600 = sbr.rel (0) target = $region37
    $region36: #{tpu_custom_call.1} parent=1 // pred_region
      %s602 = ssub.s32 2048, 2048
      %603 = vsyncadd [#allocation4], %s602
      %s604 = sshll.u32 [#allocation8], 4
      %s605 = int_to_ptr.vmem [resolvable:$true] %s604
      %610 = dma.vmem_to_hbm [thread:$0]  %s605, 2048, %s5, [#allocation4], 128, 128, 8
    $region37: #{tpu_custom_call.1} parent=1 // pred_fallthru
      _
    // Predicated region
    $region38: #{tpu_custom_call.1} parent=1 // pred_check
      _
    $region39: #{tpu_custom_call.1} parent=1 // pred_check_branch
      %612 = sbr.rel (0) target = $region41
    $region40: #{tpu_custom_call.1} parent=1 // pred_region
      %613 = dma.done [#allocation4], 2048
    $region41: #{tpu_custom_call.1} parent=1 // pred_fallthru
      _
    %614 = vsyncpa [#allocation3], 1
    %615 = vsyncpa [#allocation6], 1
    %616 = vsyncpa [#allocation4], 1

// kernel: tpu_custom_call.1
$region0: #{tpu_custom_call.1}
  #allocation0 [shape = 'u32[]', space=smem, size = 0x4, offset = 0x4, fixed_abs, tag = 'smem constant byte address 0x4 - core index']
  #allocation1 [shape = 'u32[144,128]{1,0:T(1,128)}', space=vmem, size = 0x12000, scoped, tag = 'internal scratch']
  %s0 = inlined_call_operand.hbm [shape: bf16[128,128], index: 0, kind: input, shape index: {}]
  %s1 = inlined_call_operand.hbm [shape: bf16[128,128], index: 1, kind: input, shape index: {}]
  %s2 = inlined_call_operand.vmem [shape: f32[1,128], index: 2, kind: input, shape index: {}]
  %s3 = inlined_call_operand.hbm [shape: bf16[128,128], index: 3, kind: input, shape index: {}]
  %s4 = inlined_call_operand.vmem [shape: f32[1,128], index: 4, kind: input, shape index: {}]
  %s5 = inlined_call_operand.hbm [shape: f32[128,128], index: 5, kind: output, shape index: {}]
  %s6 = sld [smem:[#allocation0]]
  $region42: #{tpu_custom_call.1} parent=0
    _
  %s8 = ssub.s32 1, %s6
  %s9 = scalar_select 0, %s8, %s6
  $region1: #{tpu_custom_call.1} parent=0
    #allocation2 [shape = 'u8[32768]{0}', space=vmem, size = 0x8000, scoped, tag = 'input window, operand 0, single buffered']
    #allocation3 [shape = 's32[1]{0}', space=sflag, size = 0x4, scoped, tag = 'scoped memory for tpu_custom_call.1']
    #allocation4 [shape = 's32[1]{0}', space=sflag, size = 0x4, scoped, tag = 'scoped memory for tpu_custom_call.1']
    #allocation5 [shape = 'u8[32768]{0}', space=vmem, size = 0x8000, scoped, tag = 'input window, operand 1, single buffered']
    #allocation6 [shape = 's32[1]{0}', space=sflag, size = 0x4, scoped, tag = 'scoped memory for tpu_custom_call.1']
    #allocation7 [shape = 'u8[32768]{0}', space=vmem, size = 0x8000, scoped, tag = 'input window, operand 3, single buffered']
    #allocation8 [shape = 'u8[65536]{0}', space=vmem, size = 0x10000, scoped, tag = 'output window, operand 0, single buffered']
    %10 = vsyncpa [#allocation3], 0
    %11 = vsyncpa [#allocation6], 0
    %12 = vsyncpa [#allocation4], 0
    // Predicated region
    $region2: #{tpu_custom_call.1} parent=1 // pred_check
      _
    $region3: #{tpu_custom_call.1} parent=1 // pred_check_branch
      %14 = sbr.rel (0) target = $region5
    $region4: #{tpu_custom_call.1} parent=1 // pred_region
      %s16 = ssub.s32 1024, 1024
      %17 = vsyncadd [#allocation3], %s16
      %s18 = sshll.u32 [#allocation2], 4
      %s19 = int_to_ptr.vmem [resolvable:$true] %s18
      %24 = dma.hbm_to_vmem [thread:$0]  %s0, 1024, %s19, [#allocation3], 64, 64, 4
    $region5: #{tpu_custom_call.1} parent=1 // pred_fallthru
      _
    // Predicated region
    $region6: #{tpu_custom_call.1} parent=1 // pred_check
      _
    $region7: #{tpu_custom_call.1} parent=1 // pred_check_branch
      %26 = sbr.rel (0) target = $region9
    $region8: #{tpu_custom_call.1} parent=1 // pred_region
      %s28 = ssub.s32 1024, 1024
      %29 = vsyncadd [#allocation6], %s28
      %s30 = sshll.u32 [#allocation5], 4
      %s31 = int_to_ptr.vmem [resolvable:$true] %s30
      %36 = dma.hbm_to_vmem [thread:$0]  %s1, 1024, %s31, [#allocation6], 64, 64, 4
    $region9: #{tpu_custom_call.1} parent=1 // pred_fallthru
      _
    // Predicated region
    $region10: #{tpu_custom_call.1} parent=1 // pred_check
      _
    $region11: #{tpu_custom_call.1} parent=1 // pred_check_branch
      %38 = sbr.rel (0) target = $region13
    $region12: #{tpu_custom_call.1} parent=1 // pred_region
      _
    $region13: #{tpu_custom_call.1} parent=1 // pred_fallthru
      _
    // Predicated region
    $region14: #{tpu_custom_call.1} parent=1 // pred_check
      _
    $region15: #{tpu_custom_call.1} parent=1 // pred_check_branch
      %40 = sbr.rel (0) target = $region17
    $region16: #{tpu_custom_call.1} parent=1 // pred_region
      %s42 = ssub.s32 1024, 1024
      %43 = vsyncadd [#allocation6], %s42
      %s44 = sshll.u32 [#allocation7], 4
      %s45 = int_to_ptr.vmem [resolvable:$true] %s44
      %50 = dma.hbm_to_vmem [thread:$0]  %s3, 1024, %s45, [#allocation6], 64, 64, 4
    $region17: #{tpu_custom_call.1} parent=1 // pred_fallthru
      _
    // Predicated region
    $region18: #{tpu_custom_call.1} parent=1 // pred_check
      _
    $region19: #{tpu_custom_call.1} parent=1 // pred_check_branch
      %52 = sbr.rel (0) target = $region21
    $region20: #{tpu_custom_call.1} parent=1 // pred_region
      _
    $region21: #{tpu_custom_call.1} parent=1 // pred_fallthru
      _
    // Predicated region
    $region22: #{tpu_custom_call.1} parent=1 // pred_check
      _
    $region23: #{tpu_custom_call.1} parent=1 // pred_check_branch
      %54 = sbr.rel (0) target = $region25
    $region24: #{tpu_custom_call.1} parent=1 // pred_region
      %55 = dma.done [#allocation3], 1024
    $region25: #{tpu_custom_call.1} parent=1 // pred_fallthru
      _
    // Predicated region
    $region26: #{tpu_custom_call.1} parent=1 // pred_check
      _
    $region27: #{tpu_custom_call.1} parent=1 // pred_check_branch
      %57 = sbr.rel (0) target = $region29
    $region28: #{tpu_custom_call.1} parent=1 // pred_region
      %58 = dma.done [#allocation6], 1024
    $region29: #{tpu_custom_call.1} parent=1 // pred_fallthru
      _
    // Predicated region
    $region30: #{tpu_custom_call.1} parent=1 // pred_check
      _
    $region31: #{tpu_custom_call.1} parent=1 // pred_check_branch
      %60 = sbr.rel (0) target = $region33
    $region32: #{tpu_custom_call.1} parent=1 // pred_region
      %61 = dma.done [#allocation6], 1024
    $region33: #{tpu_custom_call.1} parent=1 // pred_fallthru
      _
    %v63 = vld [vmem:[#allocation2] sm:$0xf]
    %v64 = vld [vmem:[#allocation2 + $0x4] sm:$0xf]
    %v65 = vld [vmem:[#allocation2 + $0x8] sm:$0xf]
    %v66 = vld [vmem:[#allocation2 + $0xc] sm:$0xf]
    %v67 = vld [vmem:[#allocation2 + $0x10] sm:$0xf]
    %v68 = vld [vmem:[#allocation2 + $0x14] sm:$0xf]
    %v69 = vld [vmem:[#allocation2 + $0x18] sm:$0xf]
    %v70 = vld [vmem:[#allocation2 + $0x1c] sm:$0xf]
    %v71 = vld [vmem:[#allocation2 + $0x20] sm:$0xf]
    %v72 = vld [vmem:[#allocation2 + $0x24] sm:$0xf]
    %v73 = vld [vmem:[#allocation2 + $0x28] sm:$0xf]
    %v74 = vld [vmem:[#allocation2 + $0x2c] sm:$0xf]
    %v75 = vld [vmem:[#allocation2 + $0x30] sm:$0xf]
    %v76 = vld [vmem:[#allocation2 + $0x34] sm:$0xf]
    %v77 = vld [vmem:[#allocation2 + $0x38] sm:$0xf]
    %v78 = vld [vmem:[#allocation2 + $0x3c] sm:$0xf]
    %v79 = vld [vmem:[#allocation5] sm:$0xf]
    %v80 = vld [vmem:[#allocation5 + $0x4] sm:$0xf]
    %v81 = vld [vmem:[#allocation5 + $0x8] sm:$0xf]
    %v82 = vld [vmem:[#allocation5 + $0xc] sm:$0xf]
    %v83 = vld [vmem:[#allocation5 + $0x10] sm:$0xf]
    %v84 = vld [vmem:[#allocation5 + $0x14] sm:$0xf]
    %v85 = vld [vmem:[#allocation5 + $0x18] sm:$0xf]
    %v86 = vld [vmem:[#allocation5 + $0x1c] sm:$0xf]
    %v87 = vld [vmem:[#allocation5 + $0x20] sm:$0xf]
    %v88 = vld [vmem:[#allocation5 + $0x24] sm:$0xf]
    %v89 = vld [vmem:[#allocation5 + $0x28] sm:$0xf]
    %v90 = vld [vmem:[#allocation5 + $0x2c] sm:$0xf]
    %v91 = vld [vmem:[#allocation5 + $0x30] sm:$0xf]
    %v92 = vld [vmem:[#allocation5 + $0x34] sm:$0xf]
    %v93 = vld [vmem:[#allocation5 + $0x38] sm:$0xf]
    %v94 = vld [vmem:[#allocation5 + $0x3c] sm:$0xf]
    %v95 = vld [vmem:[%s2] sm:$0x1]
    %v97 = vlaneseq
    %v98 = vshrl.u32 %v97, 7
    %v99 = vsub.s32 0, %v98
    %v100 = vrot.slane %v95, %v99
    %v118 = vunpack.c.l.b16 %v63
    %v119 = vunpack.c.l.b16 %v64
    %v120 = vunpack.c.l.b16 %v65
    %v121 = vunpack.c.l.b16 %v66
    %v122 = vunpack.c.l.b16 %v67
    %v123 = vunpack.c.l.b16 %v68
    %v124 = vunpack.c.l.b16 %v69
    %v125 = vunpack.c.l.b16 %v70
    %v126 = vunpack.c.l.b16 %v71
    %v127 = vunpack.c.l.b16 %v72
    %v128 = vunpack.c.l.b16 %v73
    %v129 = vunpack.c.l.b16 %v74
    %v130 = vunpack.c.l.b16 %v75
    %v131 = vunpack.c.l.b16 %v76
    %v132 = vunpack.c.l.b16 %v77
    %v133 = vunpack.c.l.b16 %v78
    %v134 = vpack.c.b16 %v119, %v118
    %v135 = vpack.c.b16 %v121, %v120
    %v136 = vpack.c.b16 %v123, %v122
    %v137 = vpack.c.b16 %v125, %v124
    %v138 = vpack.c.b16 %v127, %v126
    %v139 = vpack.c.b16 %v129, %v128
    %v140 = vpack.c.b16 %v131, %v130
    %v141 = vpack.c.b16 %v133, %v132
    %v166 = vunpack.c.l.b16 %v79
    %v167 = vunpack.c.l.b16 %v80
    %v168 = vunpack.c.l.b16 %v81
    %v169 = vunpack.c.l.b16 %v82
    %v170 = vunpack.c.l.b16 %v83
    %v171 = vunpack.c.l.b16 %v84
    %v172 = vunpack.c.l.b16 %v85
    %v173 = vunpack.c.l.b16 %v86
    %v174 = vunpack.c.l.b16 %v87
    %v175 = vunpack.c.l.b16 %v88
    %v176 = vunpack.c.l.b16 %v89
    %v177 = vunpack.c.l.b16 %v90
    %v178 = vunpack.c.l.b16 %v91
    %v179 = vunpack.c.l.b16 %v92
    %v180 = vunpack.c.l.b16 %v93
    %v181 = vunpack.c.l.b16 %v94
    %v182 = vpack.c.b16 %v167, %v166
    %v183 = vpack.c.b16 %v169, %v168
    %v184 = vpack.c.b16 %v171, %v170
    %v185 = vpack.c.b16 %v173, %v172
    %v186 = vpack.c.b16 %v175, %v174
    %v187 = vpack.c.b16 %v177, %v176
    %v188 = vpack.c.b16 %v179, %v178
    %v189 = vpack.c.b16 %v181, %v180
    %198 = vmatprep.subr.bf16.mxu0 0
    %199 = vmatpush1.bf16.msra.mxu0 %v182
    %200 = vmatprep.subr.bf16.mxu0 0
    %201 = vmatpush1.bf16.msra.mxu0 %v183
    %202 = vmatprep.subr.bf16.mxu0 0
    %203 = vmatpush1.bf16.msra.mxu0 %v184
    %204 = vmatprep.subr.bf16.mxu0 0
    %205 = vmatpush1.bf16.msra.mxu0 %v185
    %206 = vmatprep.subr.bf16.mxu0 0
    %207 = vmatpush1.bf16.msra.mxu0 %v186
    %208 = vmatprep.subr.bf16.mxu0 0
    %209 = vmatpush1.bf16.msra.mxu0 %v187
    %210 = vmatprep.subr.bf16.mxu0 0
    %211 = vmatpush1.bf16.msra.mxu0 %v188
    %212 = vmatprep.subr.bf16.mxu0 0
    %213 = vmatpush1.bf16.msra.mxu0 %v189
    %214 = vmatprep.subr.bf16.mxu0 0
    %215 = vmatpush1.bf16.msra.mxu0 0
    %216 = vmatprep.subr.bf16.mxu0 0
    %217 = vmatpush1.bf16.msra.mxu0 0
    %218 = vmatprep.subr.bf16.mxu0 0
    %219 = vmatpush1.bf16.msra.mxu0 0
    %220 = vmatprep.subr.bf16.mxu0 0
    %221 = vmatpush1.bf16.msra.mxu0 0
    %222 = vmatprep.subr.bf16.mxu0 0
    %223 = vmatpush1.bf16.msra.mxu0 0
    %224 = vmatprep.subr.bf16.mxu0 0
    %225 = vmatpush1.bf16.msra.mxu0 0
    %226 = vmatprep.subr.bf16.mxu0 0
    %227 = vmatpush1.bf16.msra.mxu0 0
    %228 = vmatprep.subr.bf16.mxu0 0
    %229 = vmatpush1.bf16.msra.mxu0 0
    %230 = vmatprep.mubr.bf16.mxu0 0
    %231 = vmatmul.mubr.bf16.gmra.mrb[0].mxu0 %v134
    %v232 = vpop.f32.mrb[0].mxu0
    %v233 = vadd.f32 %v100, %v232
    %v234 = vpop.f32.mrb[0].mxu0
    %v235 = vpop.f32.mrb[0].mxu0
    %v236 = vadd.f32 %v100, %v235
    %v237 = vpop.f32.mrb[0].mxu0
    %238 = vmatprep.mubr.bf16.mxu0 0
    %239 = vmatmul.mubr.bf16.gmra.mrb[0].mxu0 %v135
    %v240 = vpop.f32.mrb[0].mxu0
    %v241 = vadd.f32 %v100, %v240
    %v242 = vpop.f32.mrb[0].mxu0
    %v243 = vpop.f32.mrb[0].mxu0
    %v244 = vadd.f32 %v100, %v243
    %v245 = vpop.f32.mrb[0].mxu0
    %246 = vmatprep.mubr.bf16.mxu0 0
    %247 = vmatmul.mubr.bf16.gmra.mrb[0].mxu0 %v136
    %v248 = vpop.f32.mrb[0].mxu0
    %v249 = vadd.f32 %v100, %v248
    %v250 = vpop.f32.mrb[0].mxu0
    %v251 = vpop.f32.mrb[0].mxu0
    %v252 = vadd.f32 %v100, %v251
    %v253 = vpop.f32.mrb[0].mxu0
    %254 = vmatprep.mubr.bf16.mxu0 0
    %255 = vmatmul.mubr.bf16.gmra.mrb[0].mxu0 %v137
    %v256 = vpop.f32.mrb[0].mxu0
    %v257 = vadd.f32 %v100, %v256
    %v258 = vpop.f32.mrb[0].mxu0
    %v259 = vpop.f32.mrb[0].mxu0
    %v260 = vadd.f32 %v100, %v259
    %v261 = vpop.f32.mrb[0].mxu0
    %262 = vmatprep.mubr.bf16.mxu0 0
    %263 = vmatmul.mubr.bf16.gmra.mrb[0].mxu0 %v138
    %v264 = vpop.f32.mrb[0].mxu0
    %v265 = vadd.f32 %v100, %v264
    %v266 = vpop.f32.mrb[0].mxu0
    %v267 = vpop.f32.mrb[0].mxu0
    %v268 = vadd.f32 %v100, %v267
    %v269 = vpop.f32.mrb[0].mxu0
    %270 = vmatprep.mubr.bf16.mxu0 0
    %271 = vmatmul.mubr.bf16.gmra.mrb[0].mxu0 %v139
    %v272 = vpop.f32.mrb[0].mxu0
    %v273 = vadd.f32 %v100, %v272
    %v274 = vpop.f32.mrb[0].mxu0
    %v275 = vpop.f32.mrb[0].mxu0
    %v276 = vadd.f32 %v100, %v275
    %v277 = vpop.f32.mrb[0].mxu0
    %278 = vmatprep.mubr.bf16.mxu0 0
    %279 = vmatmul.mubr.bf16.gmra.mrb[0].mxu0 %v140
    %v280 = vpop.f32.mrb[0].mxu0
    %v281 = vadd.f32 %v100, %v280
    %v282 = vpop.f32.mrb[0].mxu0
    %v283 = vpop.f32.mrb[0].mxu0
    %v284 = vadd.f32 %v100, %v283
    %v285 = vpop.f32.mrb[0].mxu0
    %286 = vmatprep.mubr.bf16.mxu0 0
    %287 = vmatmul.mubr.bf16.gmra.mrb[0].mxu0 %v141
    %v288 = vpop.f32.mrb[0].mxu0
    %v289 = vadd.f32 %v100, %v288
    %v290 = vpop.f32.mrb[0].mxu0
    %v291 = vpop.f32.mrb[0].mxu0
    %v292 = vadd.f32 %v100, %v291
    %v293 = vpop.f32.mrb[0].mxu0
    %294 = vdwg.mxu0
    %v295 = vxor.u32 %v233, 2147483648
    %v296 = vxor.u32 %v236, 2147483648
    %v297 = vxor.u32 %v241, 2147483648
    %v298 = vxor.u32 %v244, 2147483648
    %v299 = vxor.u32 %v249, 2147483648
    %v300 = vxor.u32 %v252, 2147483648
    %v301 = vxor.u32 %v257, 2147483648
    %v302 = vxor.u32 %v260, 2147483648
    %v303 = vxor.u32 %v265, 2147483648
    %v304 = vxor.u32 %v268, 2147483648
    %v305 = vxor.u32 %v273, 2147483648
    %v306 = vxor.u32 %v276, 2147483648
    %v307 = vxor.u32 %v281, 2147483648
    %v308 = vxor.u32 %v284, 2147483648
    %v309 = vxor.u32 %v289, 2147483648
    %v310 = vxor.u32 %v292, 2147483648
    %v311 = vmul.f32 %v295, 1.442695
    %v312 = vpow.pop %v311
    %v313 = vmul.f32 %v296, 1.442695
    %v314 = vpow.pop %v313
    %v315 = vmul.f32 %v297, 1.442695
    %v316 = vpow.pop %v315
    %v317 = vmul.f32 %v298, 1.442695
    %v318 = vpow.pop %v317
    %v319 = vmul.f32 %v299, 1.442695
    %v320 = vpow.pop %v319
    %v321 = vmul.f32 %v300, 1.442695
    %v322 = vpow.pop %v321
    %v323 = vmul.f32 %v301, 1.442695
    %v324 = vpow.pop %v323
    %v325 = vmul.f32 %v302, 1.442695
    %v326 = vpow.pop %v325
    %v327 = vmul.f32 %v303, 1.442695
    %v328 = vpow.pop %v327
    %v329 = vmul.f32 %v304, 1.442695
    %v330 = vpow.pop %v329
    %v331 = vmul.f32 %v305, 1.442695
    %v332 = vpow.pop %v331
    %v333 = vmul.f32 %v306, 1.442695
    %v334 = vpow.pop %v333
    %v335 = vmul.f32 %v307, 1.442695
    %v336 = vpow.pop %v335
    %v337 = vmul.f32 %v308, 1.442695
    %v338 = vpow.pop %v337
    %v339 = vmul.f32 %v309, 1.442695
    %v340 = vpow.pop %v339
    %v341 = vmul.f32 %v310, 1.442695
    %v342 = vpow.pop %v341
    %v343 = vadd.f32 %v312, 1.0
    %v344 = vadd.f32 %v314, 1.0
    %v345 = vadd.f32 %v316, 1.0
    %v346 = vadd.f32 %v318, 1.0
    %v347 = vadd.f32 %v320, 1.0
    %v348 = vadd.f32 %v322, 1.0
    %v349 = vadd.f32 %v324, 1.0
    %v350 = vadd.f32 %v326, 1.0
    %v351 = vadd.f32 %v328, 1.0
    %v352 = vadd.f32 %v330, 1.0
    %v353 = vadd.f32 %v332, 1.0
    %v354 = vadd.f32 %v334, 1.0
    %v355 = vadd.f32 %v336, 1.0
    %v356 = vadd.f32 %v338, 1.0
    %v357 = vadd.f32 %v340, 1.0
    %v358 = vadd.f32 %v342, 1.0
    %v359 = vrcp.pop %v343
    %v360 = vmul.f32 1.0, %v359
    %v361 = vrcp.pop %v344
    %v362 = vmul.f32 1.0, %v361
    %v363 = vrcp.pop %v345
    %v364 = vmul.f32 1.0, %v363
    %v365 = vrcp.pop %v346
    %v366 = vmul.f32 1.0, %v365
    %v367 = vrcp.pop %v347
    %v368 = vmul.f32 1.0, %v367
    %v369 = vrcp.pop %v348
    %v370 = vmul.f32 1.0, %v369
    %v371 = vrcp.pop %v349
    %v372 = vmul.f32 1.0, %v371
    %v373 = vrcp.pop %v350
    %v374 = vmul.f32 1.0, %v373
    %v375 = vrcp.pop %v351
    %v376 = vmul.f32 1.0, %v375
    %v377 = vrcp.pop %v352
    %v378 = vmul.f32 1.0, %v377
    %v379 = vrcp.pop %v353
    %v380 = vmul.f32 1.0, %v379
    %v381 = vrcp.pop %v354
    %v382 = vmul.f32 1.0, %v381
    %v383 = vrcp.pop %v355
    %v384 = vmul.f32 1.0, %v383
    %v385 = vrcp.pop %v356
    %v386 = vmul.f32 1.0, %v385
    %v387 = vrcp.pop %v357
    %v388 = vmul.f32 1.0, %v387
    %v389 = vrcp.pop %v358
    %v390 = vmul.f32 1.0, %v389
    %v391 = vmul.f32 %v233, %v360
    %v392 = vmul.f32 %v236, %v362
    %v393 = vmul.f32 %v241, %v364
    %v394 = vmul.f32 %v244, %v366
    %v395 = vmul.f32 %v249, %v368
    %v396 = vmul.f32 %v252, %v370
    %v397 = vmul.f32 %v257, %v372
    %v398 = vmul.f32 %v260, %v374
    %v399 = vmul.f32 %v265, %v376
    %v400 = vmul.f32 %v268, %v378
    %v401 = vmul.f32 %v273, %v380
    %v402 = vmul.f32 %v276, %v382
    %v403 = vmul.f32 %v281, %v384
    %v404 = vmul.f32 %v284, %v386
    %v405 = vmul.f32 %v289, %v388
    %v406 = vmul.f32 %v292, %v390
    %v407 = vpack.c.bf16 %v392, %v391
    %v408 = vpack.c.bf16 %v394, %v393
    %v409 = vpack.c.bf16 %v396, %v395
    %v410 = vpack.c.bf16 %v398, %v397
    %v411 = vpack.c.bf16 %v400, %v399
    %v412 = vpack.c.bf16 %v402, %v401
    %v413 = vpack.c.bf16 %v404, %v403
    %v414 = vpack.c.bf16 %v406, %v405
    %v415 = vld [vmem:[#allocation7] sm:$0xf]
    %v416 = vld [vmem:[#allocation7 + $0x4] sm:$0xf]
    %v417 = vld [vmem:[#allocation7 + $0x8] sm:$0xf]
    %v418 = vld [vmem:[#allocation7 + $0xc] sm:$0xf]
    %v419 = vld [vmem:[#allocation7 + $0x10] sm:$0xf]
    %v420 = vld [vmem:[#allocation7 + $0x14] sm:$0xf]
    %v421 = vld [vmem:[#allocation7 + $0x18] sm:$0xf]
    %v422 = vld [vmem:[#allocation7 + $0x1c] sm:$0xf]
    %v423 = vld [vmem:[#allocation7 + $0x20] sm:$0xf]
    %v424 = vld [vmem:[#allocation7 + $0x24] sm:$0xf]
    %v425 = vld [vmem:[#allocation7 + $0x28] sm:$0xf]
    %v426 = vld [vmem:[#allocation7 + $0x2c] sm:$0xf]
    %v427 = vld [vmem:[#allocation7 + $0x30] sm:$0xf]
    %v428 = vld [vmem:[#allocation7 + $0x34] sm:$0xf]
    %v429 = vld [vmem:[#allocation7 + $0x38] sm:$0xf]
    %v430 = vld [vmem:[#allocation7 + $0x3c] sm:$0xf]
    %v431 = vld [vmem:[%s4] sm:$0x1]
    %v433 = vlaneseq
    %v434 = vshrl.u32 %v433, 7
    %v435 = vsub.s32 0, %v434
    %v436 = vrot.slane %v431, %v435
    %v454 = vunpack.c.l.b16 %v415
    %v455 = vunpack.c.l.b16 %v416
    %v456 = vunpack.c.l.b16 %v417
    %v457 = vunpack.c.l.b16 %v418
    %v458 = vunpack.c.l.b16 %v419
    %v459 = vunpack.c.l.b16 %v420
    %v460 = vunpack.c.l.b16 %v421
    %v461 = vunpack.c.l.b16 %v422
    %v462 = vunpack.c.l.b16 %v423
    %v463 = vunpack.c.l.b16 %v424
    %v464 = vunpack.c.l.b16 %v425
    %v465 = vunpack.c.l.b16 %v426
    %v466 = vunpack.c.l.b16 %v427
    %v467 = vunpack.c.l.b16 %v428
    %v468 = vunpack.c.l.b16 %v429
    %v469 = vunpack.c.l.b16 %v430
    %v470 = vpack.c.b16 %v455, %v454
    %v471 = vpack.c.b16 %v457, %v456
    %v472 = vpack.c.b16 %v459, %v458
    %v473 = vpack.c.b16 %v461, %v460
    %v474 = vpack.c.b16 %v463, %v462
    %v475 = vpack.c.b16 %v465, %v464
    %v476 = vpack.c.b16 %v467, %v466
    %v477 = vpack.c.b16 %v469, %v468
    %486 = vmatprep.subr.bf16.mxu0 0
    %487 = vmatpush1.bf16.msra.mxu0 %v470
    %488 = vmatprep.subr.bf16.mxu0 0
    %489 = vmatpush1.bf16.msra.mxu0 %v471
    %490 = vmatprep.subr.bf16.mxu0 0
    %491 = vmatpush1.bf16.msra.mxu0 %v472
    %492 = vmatprep.subr.bf16.mxu0 0
    %493 = vmatpush1.bf16.msra.mxu0 %v473
    %494 = vmatprep.subr.bf16.mxu0 0
    %495 = vmatpush1.bf16.msra.mxu0 %v474
    %496 = vmatprep.subr.bf16.mxu0 0
    %497 = vmatpush1.bf16.msra.mxu0 %v475
    %498 = vmatprep.subr.bf16.mxu0 0
    %499 = vmatpush1.bf16.msra.mxu0 %v476
    %500 = vmatprep.subr.bf16.mxu0 0
    %501 = vmatpush1.bf16.msra.mxu0 %v477
    %502 = vmatprep.subr.bf16.mxu0 0
    %503 = vmatpush1.bf16.msra.mxu0 0
    %504 = vmatprep.subr.bf16.mxu0 0
    %505 = vmatpush1.bf16.msra.mxu0 0
    %506 = vmatprep.subr.bf16.mxu0 0
    %507 = vmatpush1.bf16.msra.mxu0 0
    %508 = vmatprep.subr.bf16.mxu0 0
    %509 = vmatpush1.bf16.msra.mxu0 0
    %510 = vmatprep.subr.bf16.mxu0 0
    %511 = vmatpush1.bf16.msra.mxu0 0
    %512 = vmatprep.subr.bf16.mxu0 0
    %513 = vmatpush1.bf16.msra.mxu0 0
    %514 = vmatprep.subr.bf16.mxu0 0
    %515 = vmatpush1.bf16.msra.mxu0 0
    %516 = vmatprep.subr.bf16.mxu0 0
    %517 = vmatpush1.bf16.msra.mxu0 0
    %518 = vmatprep.mubr.bf16.mxu0 0
    %519 = vmatmul.mubr.bf16.gmra.mrb[0].mxu0 %v407
    %v520 = vpop.f32.mrb[0].mxu0
    %v521 = vadd.f32 %v436, %v520
    %v522 = vpop.f32.mrb[0].mxu0
    %v523 = vpop.f32.mrb[0].mxu0
    %v524 = vadd.f32 %v436, %v523
    %v525 = vpop.f32.mrb[0].mxu0
    %526 = vmatprep.mubr.bf16.mxu0 0
    %527 = vmatmul.mubr.bf16.gmra.mrb[0].mxu0 %v408
    %v528 = vpop.f32.mrb[0].mxu0
    %v529 = vadd.f32 %v436, %v528
    %v530 = vpop.f32.mrb[0].mxu0
    %v531 = vpop.f32.mrb[0].mxu0
    %v532 = vadd.f32 %v436, %v531
    %v533 = vpop.f32.mrb[0].mxu0
    %534 = vmatprep.mubr.bf16.mxu0 0
    %535 = vmatmul.mubr.bf16.gmra.mrb[0].mxu0 %v409
    %v536 = vpop.f32.mrb[0].mxu0
    %v537 = vadd.f32 %v436, %v536
    %v538 = vpop.f32.mrb[0].mxu0
    %v539 = vpop.f32.mrb[0].mxu0
    %v540 = vadd.f32 %v436, %v539
    %v541 = vpop.f32.mrb[0].mxu0
    %542 = vmatprep.mubr.bf16.mxu0 0
    %543 = vmatmul.mubr.bf16.gmra.mrb[0].mxu0 %v410
    %v544 = vpop.f32.mrb[0].mxu0
    %v545 = vadd.f32 %v436, %v544
    %v546 = vpop.f32.mrb[0].mxu0
    %v547 = vpop.f32.mrb[0].mxu0
    %v548 = vadd.f32 %v436, %v547
    %v549 = vpop.f32.mrb[0].mxu0
    %550 = vmatprep.mubr.bf16.mxu0 0
    %551 = vmatmul.mubr.bf16.gmra.mrb[0].mxu0 %v411
    %v552 = vpop.f32.mrb[0].mxu0
    %v553 = vadd.f32 %v436, %v552
    %v554 = vpop.f32.mrb[0].mxu0
    %v555 = vpop.f32.mrb[0].mxu0
    %v556 = vadd.f32 %v436, %v555
    %v557 = vpop.f32.mrb[0].mxu0
    %558 = vmatprep.mubr.bf16.mxu0 0
    %559 = vmatmul.mubr.bf16.gmra.mrb[0].mxu0 %v412
    %v560 = vpop.f32.mrb[0].mxu0
    %v561 = vadd.f32 %v436, %v560
    %v562 = vpop.f32.mrb[0].mxu0
    %v563 = vpop.f32.mrb[0].mxu0
    %v564 = vadd.f32 %v436, %v563
    %v565 = vpop.f32.mrb[0].mxu0
    %566 = vmatprep.mubr.bf16.mxu0 0
    %567 = vmatmul.mubr.bf16.gmra.mrb[0].mxu0 %v413
    %v568 = vpop.f32.mrb[0].mxu0
    %v569 = vadd.f32 %v436, %v568
    %v570 = vpop.f32.mrb[0].mxu0
    %v571 = vpop.f32.mrb[0].mxu0
    %v572 = vadd.f32 %v436, %v571
    %v573 = vpop.f32.mrb[0].mxu0
    %574 = vmatprep.mubr.bf16.mxu0 0
    %575 = vmatmul.mubr.bf16.gmra.mrb[0].mxu0 %v414
    %v576 = vpop.f32.mrb[0].mxu0
    %v577 = vadd.f32 %v436, %v576
    %v578 = vpop.f32.mrb[0].mxu0
    %v579 = vpop.f32.mrb[0].mxu0
    %v580 = vadd.f32 %v436, %v579
    %v581 = vpop.f32.mrb[0].mxu0
    %582 = vdwg.mxu0
    %583 = vst [vmem:[#allocation8] sm:$0xff] %v521
    %584 = vst [vmem:[#allocation8 + $0x8] sm:$0xff] %v524
    %585 = vst [vmem:[#allocation8 + $0x10] sm:$0xff] %v529
    %586 = vst [vmem:[#allocation8 + $0x18] sm:$0xff] %v532
    %587 = vst [vmem:[#allocation8 + $0x20] sm:$0xff] %v537
    %588 = vst [vmem:[#allocation8 + $0x28] sm:$0xff] %v540
    %589 = vst [vmem:[#allocation8 + $0x30] sm:$0xff] %v545
    %590 = vst [vmem:[#allocation8 + $0x38] sm:$0xff] %v548
    %591 = vst [vmem:[#allocation8 + $0x40] sm:$0xff] %v553
    %592 = vst [vmem:[#allocation8 + $0x48] sm:$0xff] %v556
    %593 = vst [vmem:[#allocation8 + $0x50] sm:$0xff] %v561
    %594 = vst [vmem:[#allocation8 + $0x58] sm:$0xff] %v564
    %595 = vst [vmem:[#allocation8 + $0x60] sm:$0xff] %v569
    %596 = vst [vmem:[#allocation8 + $0x68] sm:$0xff] %v572
    %597 = vst [vmem:[#allocation8 + $0x70] sm:$0xff] %v577
    %598 = vst [vmem:[#allocation8 + $0x78] sm:$0xff] %v580
    // Predicated region
    $region34: #{tpu_custom_call.1} parent=1 // pred_check
      _
    $region35: #{tpu_custom_call.1} parent=1 // pred_check_branch
      %600 = sbr.rel (0) target = $region37
    $region36: #{tpu_custom_call.1} parent=1 // pred_region
      %s602 = ssub.s32 2048, 2048
      %603 = vsyncadd [#allocation4], %s602
      %s604 = sshll.u32 [#allocation8], 4
      %s605 = int_to_ptr.vmem [resolvable:$true] %s604
      %610 = dma.vmem_to_hbm [thread:$0]  %s605, 2048, %s5, [#allocation4], 128, 128, 8
    $region37: #{tpu_custom_call.1} parent=1 // pred_fallthru
      _
    // Predicated region
    $region38: #{tpu_custom_call.1} parent=1 // pred_check
      _
    $region39: #{tpu_custom_call.1} parent=1 // pred_check_branch
      %612 = sbr.rel (0) target = $region41
    $region40: #{tpu_custom_call.1} parent=1 // pred_region
      %613 = dma.done [#allocation4], 2048
    $region41: #{tpu_custom_call.1} parent=1 // pred_fallthru
      _
    %614 = vsyncpa [#allocation3], 1
    %615 = vsyncpa [#allocation6], 1
    %616 = vsyncpa [#allocation4], 1

</llo_original>
